<compile_context>
chip_gen: v5e
topology: v5e:2x2
jax: 0.10.0
libtpu: 0.0.40
codegen_flags: <defaults>
</compile_context>

<pallas_src>
import functools

import jax
import jax.numpy as jnp
from jax import lax
from jax.experimental import pallas as pl
from jax.experimental.pallas import tpu as pltpu

_G_TILE_BYTES = 2 * 1024 * 1024   # per g VMEM buffer (double-buffered by Pallas)

# state_in slab row layout
_ROW_M, _ROW_V, _ROW_EV, _ROW_BC1, _ROW_BC2 = 0, 1, 2, 3, 4


def _sublane_align(dtype):
    """Sublane packing for the dtype: 8 (f32), 16 (bf16/f16), 32 (int8/fp8)."""
    return max(8, 32 // jnp.dtype(dtype).itemsize)


def _recorder_kernel(beta1, beta2, n_total, tn, strip_rows, ragged_n,
                     # inputs
                     g_ref,          # (TN, TC) tile of g, native dtype
                     state_in_ref,   # (8, TC): rows m, v, ev, 1/(1-b1^t), 1/(1-b2^t)
                     # outputs
                     state_out_ref,  # (8, TC): m, v, ev, mu_hat, mu2_hat, avg_var_hat, var_hat, 0
                     # scratch
                     sum_acc, sq_acc):
    k = pl.program_id(1)
    tc = sum_acc.shape[1]

    @pl.when(k == 0)
    def _init():
        sum_acc[...] = jnp.zeros_like(sum_acc)
        sq_acc[...] = jnp.zeros_like(sq_acc)

    num_strips = tn // strip_rows
    rem = tn - num_strips * strip_rows          # only non-zero on single-block path
    base_row = k * tn                           # used only when ragged_n

    def do_strip(r0):
        # Load an `strip_rows`-row strip straight from the ref and cast in vregs.
        s = g_ref[pl.ds(r0, strip_rows), :].astype(jnp.float32)
        if ragged_n:
            rows = base_row + r0 + lax.broadcasted_iota(
                jnp.int32, (strip_rows, tc), 0)
            s = jnp.where(rows < n_total, s, 0.0)
        # Pure VPU adds over 8-sublane groups; squares never hit VMEM.
        acc_s = s[0:8, :]
        acc_q = acc_s * acc_s
        for gi in range(1, strip_rows // 8):
            blk = s[gi * 8:(gi + 1) * 8, :]
            acc_s = acc_s + blk
            acc_q = acc_q + blk * blk
        sum_acc[...] += acc_s
        sq_acc[...] += acc_q

    if num_strips > 0:
        if num_strips <= 8:
            for i in range(num_strips):          # trace-time unroll (short loops)
                do_strip(i * strip_rows)
        else:
            def body(i, carry):
                do_strip(pl.multiple_of(i * strip_rows, strip_rows))
                return carry
            lax.fori_loop(0, num_strips, body, 0)

    if rem > 0:
        # Static tail (only on the single-reduction-block path, so never ragged).
        t = g_ref[pl.ds(num_strips * strip_rows, rem), :].astype(jnp.float32)
        sum_acc[0:1, :] = sum_acc[0:1, :] + jnp.sum(t, axis=0, keepdims=True)
        sq_acc[0:1, :] = sq_acc[0:1, :] + jnp.sum(t * t, axis=0, keepdims=True)

    @pl.when(k == pl.num_programs(1) - 1)
    def _finalize():
        inv_n = jnp.float32(1.0 / n_total)
        # n_total == 1 yields nan (matches torch unbiased var of a single sample).
        var_scale = (jnp.float32(n_total / (n_total - 1)) if n_total > 1
                     else jnp.float32(float("nan")))

        s = jnp.sum(sum_acc[...], axis=0, keepdims=True)   # single XLU reduce
        q = jnp.sum(sq_acc[...], axis=0, keepdims=True)
        g_mean = s * inv_n
        g2_mean = q * inv_n
        ev_g = jnp.maximum(g2_mean - g_mean * g_mean, 0.0) * var_scale

        m_old = state_in_ref[_ROW_M:_ROW_M + 1, :]
        v_old = state_in_ref[_ROW_V:_ROW_V + 1, :]
        ev_old = state_in_ref[_ROW_EV:_ROW_EV + 1, :]
        bc1_inv = state_in_ref[_ROW_BC1:_ROW_BC1 + 1, :]   # 1 / (1 - beta1**t)
        bc2_inv = state_in_ref[_ROW_BC2:_ROW_BC2 + 1, :]   # 1 / (1 - beta2**t)

        m_new = beta1 * m_old + (1.0 - beta1) * g_mean
        v_new = beta2 * v_old + (1.0 - beta2) * g2_mean
        ev_new = beta2 * ev_old + (1.0 - beta2) * ev_g

        mu_hat = m_new * bc1_inv
        mu2_hat = v_new * bc2_inv
        avg_var_hat = ev_new * bc2_inv
        var_hat = mu2_hat - mu_hat * mu_hat

        # Row-wise writes (no sublane concatenate / relayout in the epilogue).
        state_out_ref[0:1, :] = m_new
        state_out_ref[1:2, :] = v_new
        state_out_ref[2:3, :] = ev_new
        state_out_ref[3:4, :] = mu_hat
        state_out_ref[4:5, :] = mu2_hat
        state_out_ref[5:6, :] = avg_var_hat
        state_out_ref[6:7, :] = var_hat
        state_out_ref[7:8, :] = jnp.zeros_like(m_new)


def single_statistic_recorder_forward(g, state, beta1=0.9, beta2=0.999, epislon=1e-8):
    """One forward step of Single_Statistic_Recorder (reduction='mean' path).

    g:     (N, C) array, any float/int dtype (reduced over axis 0; C -> lanes).
    state: dict with keys t (scalar), m, v, ev, mu_hat, mu2_hat, avg_var_hat,
           var_hat, each (C,) float32.
    Returns (x, new_state) with x == g (identity, as in the torch module).
    `epislon` is accepted but unused, matching the torch forward.
    """
    n, c = g.shape
    f32 = jnp.float32
    itemsize = jnp.dtype(g.dtype).itemsize
    align = _sublane_align(g.dtype)

    # ---- channel (lane) tile: multiple of 128 capped at 512; >=2 blocks when
    #      possible so the "parallel" axis can be sharded across v7x's 2 TCs.
    if c < 256:
        tc = c                                            # full-dim block (legal)
    else:
        tc = max(128, min(512, (c // 2 // 128) * 128))
    num_c_blocks = pl.cdiv(c, tc)
    c_pad = num_c_blocks * tc

    # ---- reduction (sublane) tile: byte-capped (~2 MiB/buffer -> 4 MiB double-
    #      buffered; within every chip's scoped-VMEM default).
    cap_rows = max(align, ((_G_TILE_BYTES // (tc * itemsize)) // align) * align)
    if n <= cap_rows:
        tn, num_n_blocks, ragged_n = n, 1, False          # full-dim block
    else:
        tn = cap_rows
        num_n_blocks = pl.cdiv(n, tn)
        ragged_n = (n % tn != 0)                          # masked in-kernel

    # ---- hoisted scalar state: step counter & bias-correction reciprocals.
    t_new = jnp.asarray(state["t"], f32) + 1.0
    bc1_inv = 1.0 / (1.0 - jnp.power(jnp.float32(beta1), t_new))
    bc2_inv = 1.0 / (1.0 - jnp.power(jnp.float32(beta2), t_new))

    # ---- pack prior per-channel state + bias-correction rows into one (8, C) slab.
    state_in = jnp.concatenate(
        [jnp.asarray(state["m"], f32).reshape(1, c),
         jnp.asarray(state["v"], f32).reshape(1, c),
         jnp.asarray(state["ev"], f32).reshape(1, c),
         jnp.broadcast_to(bc1_inv, (1, c)).astype(f32),
         jnp.broadcast_to(bc2_inv, (1, c)).astype(f32),
         jnp.zeros((3, c), f32)], axis=0)
    if c_pad != c:
        state_in = jnp.pad(state_in, ((0, 0), (0, c_pad - c)))

    kernel = functools.partial(_recorder_kernel, float(beta1), float(beta2),
                               int(n), int(tn), int(align), bool(ragged_n))

    cost = pl.CostEstimate(
        flops=3 * n * c,
        transcendentals=0,
        bytes_accessed=n * c * itemsize + 2 * 8 * c_pad * 4)

    state_out = pl.pallas_call(
        kernel,
        out_shape=jax.ShapeDtypeStruct((8, c_pad), f32),
        grid_spec=pltpu.PrefetchScalarGridSpec(
            num_scalar_prefetch=0,
            grid=(num_c_blocks, num_n_blocks),   # channel parallel, reduction last
            in_specs=[
                pl.BlockSpec((tn, tc), lambda j, k: (k, j)),   # g tiles, native dtype
                pl.BlockSpec((8, tc), lambda j, k: (0, j)),    # packed prior state
            ],
            out_specs=pl.BlockSpec((8, tc), lambda j, k: (0, j)),
            scratch_shapes=[pltpu.VMEM((8, tc), f32),          # running sum
                            pltpu.VMEM((8, tc), f32)],         # running sum of squares
        ),
        compiler_params=pltpu.CompilerParams(
            dimension_semantics=("parallel", "arbitrary")),
        cost_estimate=cost,
    )(g, state_in)

    new_state = {
        "t": t_new.reshape(()),
        "m": state_out[0, :c],
        "v": state_out[1, :c],
        "ev": state_out[2, :c],
        "mu_hat": state_out[3, :c],
        "mu2_hat": state_out[4, :c],
        "avg_var_hat": state_out[5, :c],
        "var_hat": state_out[6, :c],
    }
    # Identity pass-through (no extra HBM copy issued by the kernel).
    return g, new_state


def init_state(channel):
    z = jnp.zeros((channel,), jnp.float32)
    return {
        "t": jnp.zeros((), jnp.float32),
        "m": z, "v": z, "ev": z,
        "mu_hat": z, "mu2_hat": z, "avg_var_hat": z, "var_hat": z,
    }


def _reference(g, state, beta1=0.9, beta2=0.999):
    # Pure-JAX reference of the torch semantics (f32 math) for correctness checks.
    g = g.astype(jnp.float32)
    g2 = jnp.mean(g * g, axis=0)
    ev_g = jnp.var(g, axis=0, ddof=1)
    gm = jnp.mean(g, axis=0)
    t = state["t"] + 1.0
    m = beta1 * state["m"] + (1 - beta1) * gm
    v = beta2 * state["v"] + (1 - beta2) * g2
    ev = beta2 * state["ev"] + (1 - beta2) * ev_g
    mu_hat = m / (1 - beta1 ** t)
    mu2_hat = v / (1 - beta2 ** t)
    avg_var_hat = ev / (1 - beta2 ** t)
    var_hat = mu2_hat - mu_hat ** 2
    return g, {"t": t, "m": m, "v": v, "ev": ev, "mu_hat": mu_hat,
               "mu2_hat": mu2_hat, "avg_var_hat": avg_var_hat, "var_hat": var_hat}


def _check(state, rstate, x, x_expect, tag, tol):
    keys = ("t", "m", "v", "ev", "mu_hat", "mu2_hat", "avg_var_hat", "var_hat")
    for k in keys:
        assert jnp.allclose(state[k], rstate[k], atol=tol, rtol=tol), (tag, k)
    assert jnp.array_equal(x, x_expect), (tag, "x")


if __name__ == "__main__":
    key = jax.random.PRNGKey(0)

    # --- small shape: single-tile path, two chained forward steps ---
    N, C = 8, 32
    g = jax.random.normal(key, (N, C), dtype=jnp.float32)
    state = init_state(C)
    x, state = single_statistic_recorder_forward(g, state)
    x, state = single_statistic_recorder_forward(g * 0.5 + 1.0, state)
    jax.block_until_ready(state["var_hat"])
    rstate = init_state(C)
    _, rstate = _reference(g, rstate)
    _, rstate = _reference(g * 0.5 + 1.0, rstate)
    _check(state, rstate, x, g * 0.5 + 1.0, "small", 1e-4)

    # --- multi-block grid with ragged reduction axis (masked tail), f32 ---
    N2, C2 = 1200, 1024
    g2 = jax.random.normal(jax.random.PRNGKey(1), (N2, C2), dtype=jnp.float32) * 0.3 + 0.7
    s2 = init_state(C2)
    x2, s2 = single_statistic_recorder_forward(g2, s2)
    jax.block_until_ready(s2["var_hat"])
    r2 = init_state(C2)
    _, r2 = _reference(g2, r2)
    _check(s2, r2, x2, g2, "tiled_ragged", 2e-4)

    # --- bf16 input: in-kernel cast, 16-row strips + static tail, non-128 C ---
    N3, C3 = 300, 96
    g3 = (jax.random.normal(jax.random.PRNGKey(2), (N3, C3), dtype=jnp.float32) * 0.5
          ).astype(jnp.bfloat16)
    s3 = init_state(C3)
    x3, s3 = single_statistic_recorder_forward(g3, s3)
    jax.block_until_ready(s3["var_hat"])
    r3 = init_state(C3)
    _, r3 = _reference(g3, r3)
    _check(s3, r3, x3, g3, "bf16_tail", 1e-3)

    print("KERNEL_OK")
</pallas_src>

<mosaic_0001>
module attributes {stable_mosaic.version = 11 : i64} {
  func.func @_recorder_kernel(%arg0: i32, %arg1: i32, %arg2: memref<8x32xf32, #tpu.memory_space<vmem>>, %arg3: memref<8x32xf32, #tpu.memory_space<vmem>>, %arg4: memref<8x32xf32, #tpu.memory_space<vmem>>, %arg5: memref<8x32xf32, #tpu.memory_space<vmem>>, %arg6: memref<8x32xf32, #tpu.memory_space<vmem>>) attributes {dimension_semantics = [#tpu.dimension_semantics<parallel>, #tpu.dimension_semantics<arbitrary>], iteration_bounds = array<i64: 1, 1>, scalar_prefetch = 0 : i64, scratch_operands = 2 : i64, tpu.core_type = #tpu.core_type<tc>, window_params = [{transform_indices = @transform_0, window_bounds = array<i64: 8, 32>}, {transform_indices = @transform_1, window_bounds = array<i64: 8, 32>}, {transform_indices = @transform_2, window_bounds = array<i64: 8, 32>}]} {
    %c0_i32 = arith.constant 0 : i32
    %0 = arith.cmpi eq, %arg1, %c0_i32 : i32
    %1 = arith.extui %0 : i1 to i32
    %c0_i32_0 = arith.constant 0 : i32
    %2 = arith.cmpi ne, %1, %c0_i32_0 : i32
    scf.if %2 {
      %cst = arith.constant 0.000000e+00 : f32
      %14 = vector.broadcast %cst : f32 to vector<8x32xf32>
      %c0_12 = arith.constant 0 : index
      %c0_13 = arith.constant 0 : index
      %15 = vector.load %arg5[%c0_12, %c0_13] : memref<8x32xf32, #tpu.memory_space<vmem>>, vector<8x32xf32>
      tpu.vector_store %arg5[%c0_12, %c0_13], %14 {strides = array<i32>} : memref<8x32xf32, #tpu.memory_space<vmem>>, vector<8x32xf32>,
      %cst_14 = arith.constant 0.000000e+00 : f32
      %16 = vector.broadcast %cst_14 : f32 to vector<8x32xf32>
      %c0_15 = arith.constant 0 : index
      %c0_16 = arith.constant 0 : index
      %17 = vector.load %arg6[%c0_15, %c0_16] : memref<8x32xf32, #tpu.memory_space<vmem>>, vector<8x32xf32>
      tpu.vector_store %arg6[%c0_15, %c0_16], %16 {strides = array<i32>} : memref<8x32xf32, #tpu.memory_space<vmem>>, vector<8x32xf32>,
    } else {
    }
    %c0 = arith.constant 0 : index
    %c0_1 = arith.constant 0 : index
    %3 = vector.load %arg2[%c0, %c0_1] : memref<8x32xf32, #tpu.memory_space<vmem>>, vector<8x32xf32>
    %4 = arith.mulf %3, %3 : vector<8x32xf32>
    %c0_2 = arith.constant 0 : index
    %c0_3 = arith.constant 0 : index
    %5 = vector.load %arg5[%c0_2, %c0_3] : memref<8x32xf32, #tpu.memory_space<vmem>>, vector<8x32xf32>
    %6 = arith.addf %5, %3 : vector<8x32xf32>
    %c0_4 = arith.constant 0 : index
    %c0_5 = arith.constant 0 : index
    %7 = vector.load %arg5[%c0_4, %c0_5] : memref<8x32xf32, #tpu.memory_space<vmem>>, vector<8x32xf32>
    tpu.vector_store %arg5[%c0_4, %c0_5], %6 {strides = array<i32>} : memref<8x32xf32, #tpu.memory_space<vmem>>, vector<8x32xf32>,
    %c0_6 = arith.constant 0 : index
    %c0_7 = arith.constant 0 : index
    %8 = vector.load %arg6[%c0_6, %c0_7] : memref<8x32xf32, #tpu.memory_space<vmem>>, vector<8x32xf32>
    %9 = arith.addf %8, %4 : vector<8x32xf32>
    %c0_8 = arith.constant 0 : index
    %c0_9 = arith.constant 0 : index
    %10 = vector.load %arg6[%c0_8, %c0_9] : memref<8x32xf32, #tpu.memory_space<vmem>>, vector<8x32xf32>
    tpu.vector_store %arg6[%c0_8, %c0_9], %9 {strides = array<i32>} : memref<8x32xf32, #tpu.memory_space<vmem>>, vector<8x32xf32>,
    %c0_i32_10 = arith.constant 0 : i32
    %11 = arith.cmpi eq, %arg1, %c0_i32_10 : i32
    %12 = arith.extui %11 : i1 to i32
    %c0_i32_11 = arith.constant 0 : i32
    %13 = arith.cmpi ne, %12, %c0_i32_11 : i32
    scf.if %13 {
      %c0_12 = arith.constant 0 : index
      %c0_13 = arith.constant 0 : index
      %14 = vector.load %arg5[%c0_12, %c0_13] : memref<8x32xf32, #tpu.memory_space<vmem>>, vector<8x32xf32>
      %cst = arith.constant dense<0.000000e+00> : vector<32xf32>
      %15 = vector.multi_reduction <add>, %14, %cst [0] : vector<8x32xf32> to vector<32xf32>
      %16 = vector.shape_cast %15 : vector<32xf32> to vector<1x32xf32>
      %c0_14 = arith.constant 0 : index
      %c0_15 = arith.constant 0 : index
      %17 = vector.load %arg6[%c0_14, %c0_15] : memref<8x32xf32, #tpu.memory_space<vmem>>, vector<8x32xf32>
      %cst_16 = arith.constant dense<0.000000e+00> : vector<32xf32>
      %18 = vector.multi_reduction <add>, %17, %cst_16 [0] : vector<8x32xf32> to vector<32xf32>
      %19 = vector.shape_cast %18 : vector<32xf32> to vector<1x32xf32>
      %cst_17 = arith.constant 1.250000e-01 : f32
      %20 = vector.broadcast %cst_17 : f32 to vector<1x32xf32>
      %21 = arith.mulf %16, %20 : vector<1x32xf32>
      %cst_18 = arith.constant 1.250000e-01 : f32
      %22 = vector.broadcast %cst_18 : f32 to vector<1x32xf32>
      %23 = arith.mulf %19, %22 : vector<1x32xf32>
      %24 = arith.mulf %21, %21 : vector<1x32xf32>
      %25 = arith.subf %23, %24 : vector<1x32xf32>
      %cst_19 = arith.constant 0.000000e+00 : f32
      %26 = vector.broadcast %cst_19 : f32 to vector<1x32xf32>
      %27 = arith.maximumf %25, %26 : vector<1x32xf32>
      %cst_20 = arith.constant 1.14285719 : f32
      %28 = vector.broadcast %cst_20 : f32 to vector<1x32xf32>
      %29 = arith.mulf %27, %28 : vector<1x32xf32>
      %c0_21 = arith.constant 0 : index
      %c0_22 = arith.constant 0 : index
      %30 = vector.load %arg3[%c0_21, %c0_22] : memref<8x32xf32, #tpu.memory_space<vmem>>, vector<1x32xf32>
      %c1 = arith.constant 1 : index
      %c0_23 = arith.constant 0 : index
      %31 = vector.load %arg3[%c1, %c0_23] : memref<8x32xf32, #tpu.memory_space<vmem>>, vector<1x32xf32>
      %c2 = arith.constant 2 : index
      %c0_24 = arith.constant 0 : index
      %32 = vector.load %arg3[%c2, %c0_24] : memref<8x32xf32, #tpu.memory_space<vmem>>, vector<1x32xf32>
      %c3 = arith.constant 3 : index
      %c0_25 = arith.constant 0 : index
      %33 = vector.load %arg3[%c3, %c0_25] : memref<8x32xf32, #tpu.memory_space<vmem>>, vector<1x32xf32>
      %c4 = arith.constant 4 : index
      %c0_26 = arith.constant 0 : index
      %34 = vector.load %arg3[%c4, %c0_26] : memref<8x32xf32, #tpu.memory_space<vmem>>, vector<1x32xf32>
      %cst_27 = arith.constant 0.899999976 : f32
      %35 = vector.broadcast %cst_27 : f32 to vector<1x32xf32>
      %36 = arith.mulf %35, %30 : vector<1x32xf32>
      %cst_28 = arith.constant 1.000000e-01 : f32
      %37 = vector.broadcast %cst_28 : f32 to vector<1x32xf32>
      %38 = arith.mulf %37, %21 : vector<1x32xf32>
      %39 = arith.addf %36, %38 : vector<1x32xf32>
      %cst_29 = arith.constant 9.990000e-01 : f32
      %40 = vector.broadcast %cst_29 : f32 to vector<1x32xf32>
      %41 = arith.mulf %40, %31 : vector<1x32xf32>
      %cst_30 = arith.constant 1.000000e-03 : f32
      %42 = vector.broadcast %cst_30 : f32 to vector<1x32xf32>
      %43 = arith.mulf %42, %23 : vector<1x32xf32>
      %44 = arith.addf %41, %43 : vector<1x32xf32>
      %cst_31 = arith.constant 9.990000e-01 : f32
      %45 = vector.broadcast %cst_31 : f32 to vector<1x32xf32>
      %46 = arith.mulf %45, %32 : vector<1x32xf32>
      %cst_32 = arith.constant 1.000000e-03 : f32
      %47 = vector.broadcast %cst_32 : f32 to vector<1x32xf32>
      %48 = arith.mulf %47, %29 : vector<1x32xf32>
      %49 = arith.addf %46, %48 : vector<1x32xf32>
      %50 = arith.mulf %39, %33 : vector<1x32xf32>
      %51 = arith.mulf %44, %34 : vector<1x32xf32>
      %52 = arith.mulf %49, %34 : vector<1x32xf32>
      %53 = arith.mulf %50, %50 : vector<1x32xf32>
      %54 = arith.subf %51, %53 : vector<1x32xf32>
      %c0_33 = arith.constant 0 : index
      %c0_34 = arith.constant 0 : index
      %55 = vector.load %arg4[%c0_33, %c0_34] : memref<8x32xf32, #tpu.memory_space<vmem>>, vector<1x32xf32>
      tpu.vector_store %arg4[%c0_33, %c0_34], %39 {strides = array<i32>} : memref<8x32xf32, #tpu.memory_space<vmem>>, vector<1x32xf32>,
      %c1_35 = arith.constant 1 : index
      %c0_36 = arith.constant 0 : index
      %56 = vector.load %arg4[%c1_35, %c0_36] : memref<8x32xf32, #tpu.memory_space<vmem>>, vector<1x32xf32>
      tpu.vector_store %arg4[%c1_35, %c0_36], %44 {strides = array<i32>} : memref<8x32xf32, #tpu.memory_space<vmem>>, vector<1x32xf32>,
      %c2_37 = arith.constant 2 : index
      %c0_38 = arith.constant 0 : index
      %57 = vector.load %arg4[%c2_37, %c0_38] : memref<8x32xf32, #tpu.memory_space<vmem>>, vector<1x32xf32>
      tpu.vector_store %arg4[%c2_37, %c0_38], %49 {strides = array<i32>} : memref<8x32xf32, #tpu.memory_space<vmem>>, vector<1x32xf32>,
      %c3_39 = arith.constant 3 : index
      %c0_40 = arith.constant 0 : index
      %58 = vector.load %arg4[%c3_39, %c0_40] : memref<8x32xf32, #tpu.memory_space<vmem>>, vector<1x32xf32>
      tpu.vector_store %arg4[%c3_39, %c0_40], %50 {strides = array<i32>} : memref<8x32xf32, #tpu.memory_space<vmem>>, vector<1x32xf32>,
      %c4_41 = arith.constant 4 : index
      %c0_42 = arith.constant 0 : index
      %59 = vector.load %arg4[%c4_41, %c0_42] : memref<8x32xf32, #tpu.memory_space<vmem>>, vector<1x32xf32>
      tpu.vector_store %arg4[%c4_41, %c0_42], %51 {strides = array<i32>} : memref<8x32xf32, #tpu.memory_space<vmem>>, vector<1x32xf32>,
      %c5 = arith.constant 5 : index
      %c0_43 = arith.constant 0 : index
      %60 = vector.load %arg4[%c5, %c0_43] : memref<8x32xf32, #tpu.memory_space<vmem>>, vector<1x32xf32>
      tpu.vector_store %arg4[%c5, %c0_43], %52 {strides = array<i32>} : memref<8x32xf32, #tpu.memory_space<vmem>>, vector<1x32xf32>,
      %c6 = arith.constant 6 : index
      %c0_44 = arith.constant 0 : index
      %61 = vector.load %arg4[%c6, %c0_44] : memref<8x32xf32, #tpu.memory_space<vmem>>, vector<1x32xf32>
      tpu.vector_store %arg4[%c6, %c0_44], %54 {strides = array<i32>} : memref<8x32xf32, #tpu.memory_space<vmem>>, vector<1x32xf32>,
      %cst_45 = arith.constant 0.000000e+00 : f32
      %62 = vector.broadcast %cst_45 : f32 to vector<1x32xf32>
      %c7 = arith.constant 7 : index
      %c0_46 = arith.constant 0 : index
      %63 = vector.load %arg4[%c7, %c0_46] : memref<8x32xf32, #tpu.memory_space<vmem>>, vector<1x32xf32>
      tpu.vector_store %arg4[%c7, %c0_46], %62 {strides = array<i32>} : memref<8x32xf32, #tpu.memory_space<vmem>>, vector<1x32xf32>,
    } else {
    }
    return
  }
  func.func @transform_0(%arg0: i32, %arg1: i32) -> (i32, i32) {
    %c0_i32 = arith.constant 0 : i32
    return %arg1, %arg0 : i32, i32
  }
  func.func @transform_1(%arg0: i32, %arg1: i32) -> (i32, i32) {
    %c0_i32 = arith.constant 0 : i32
    %c0_i32_0 = arith.constant 0 : i32
    return %c0_i32, %arg0 : i32, i32
  }
  func.func @transform_2(%arg0: i32, %arg1: i32) -> (i32, i32) {
    %c0_i32 = arith.constant 0 : i32
    %c0_i32_0 = arith.constant 0 : i32
    return %c0_i32, %arg0 : i32, i32
  }
}

</mosaic_0001>

<llo_original>
// kernel: tpu_custom_call.1
$region0: #{tpu_custom_call.1}
  #allocation0 [shape = 'u32[]', space=smem, size = 0x4, offset = 0x4, fixed_abs, tag = 'smem constant byte address 0x4 - core index']
  #allocation1 [shape = 'u32[72,128]{1,0:T(1,128)}', space=vmem, size = 0x9000, scoped, tag = 'internal scratch']
  #allocation2 [shape = 'f32[8,32]{1,0:T(8,128)}', space=vmem, size = 0x1000, scoped, tag = 'scratch operand']
  #allocation3 [shape = 'f32[8,32]{1,0:T(8,128)}', space=vmem, size = 0x1000, scoped, tag = 'scratch operand']
  %s0 = inlined_call_operand.hbm [shape: f32[8,32], index: 0, kind: input, shape index: {}]
  %s1 = inlined_call_operand.hbm [shape: f32[8,32], index: 1, kind: input, shape index: {}]
  %s2 = inlined_call_operand.hbm [shape: f32[8,32], index: 2, kind: output, shape index: {}]
  %s3 = sld [smem:[#allocation0]]
  $region34: #{tpu_custom_call.1} parent=0
    _
  %s5 = ssub.s32 1, %s3
  %s6 = scalar_select 0, %s5, %s3
  $region1: #{tpu_custom_call.1} parent=0
    #allocation4 [shape = 'u8[4096]{0}', space=vmem, size = 0x1000, scoped, tag = 'input window, operand 0, single buffered']
    #allocation5 [shape = 's32[1]{0}', space=sflag, size = 0x4, scoped, tag = 'scoped memory for tpu_custom_call.1']
    #allocation6 [shape = 's32[1]{0}', space=sflag, size = 0x4, scoped, tag = 'scoped memory for tpu_custom_call.1']
    #allocation7 [shape = 'u8[4096]{0}', space=vmem, size = 0x1000, scoped, tag = 'input window, operand 1, single buffered']
    #allocation8 [shape = 's32[1]{0}', space=sflag, size = 0x4, scoped, tag = 'scoped memory for tpu_custom_call.1']
    #allocation9 [shape = 'u8[4096]{0}', space=vmem, size = 0x1000, scoped, tag = 'output window, operand 0, single buffered']
    %7 = vsyncpa [#allocation5], 0
    %8 = vsyncpa [#allocation8], 0
    %9 = vsyncpa [#allocation6], 0
    // Predicated region
    $region2: #{tpu_custom_call.1} parent=1 // pred_check
      _
    $region3: #{tpu_custom_call.1} parent=1 // pred_check_branch
      %11 = sbr.rel (0) target = $region5
    $region4: #{tpu_custom_call.1} parent=1 // pred_region
      %13 = vsyncadd [#allocation5], 0
      %s15 = sshll.u32 %s0, 4
      %s16 = int_to_ptr.hbm [resolvable:$true] %s15
      %s17 = sshll.u32 [#allocation4], 4
      %s18 = int_to_ptr.vmem [resolvable:$true] %s17
      %20 = dma.hbm_to_vmem [thread:$0]  %s16, 128, %s18, [#allocation5]
    $region5: #{tpu_custom_call.1} parent=1 // pred_fallthru
      _
    // Predicated region
    $region6: #{tpu_custom_call.1} parent=1 // pred_check
      _
    $region7: #{tpu_custom_call.1} parent=1 // pred_check_branch
      %22 = sbr.rel (0) target = $region9
    $region8: #{tpu_custom_call.1} parent=1 // pred_region
      %24 = vsyncadd [#allocation8], 0
      %s26 = sshll.u32 %s1, 4
      %s27 = int_to_ptr.hbm [resolvable:$true] %s26
      %s28 = sshll.u32 [#allocation7], 4
      %s29 = int_to_ptr.vmem [resolvable:$true] %s28
      %31 = dma.hbm_to_vmem [thread:$0]  %s27, 128, %s29, [#allocation8]
    $region9: #{tpu_custom_call.1} parent=1 // pred_fallthru
      _
    // Predicated region
    $region10: #{tpu_custom_call.1} parent=1 // pred_check
      _
    $region11: #{tpu_custom_call.1} parent=1 // pred_check_branch
      %33 = sbr.rel (0) target = $region13
    $region12: #{tpu_custom_call.1} parent=1 // pred_region
      %35 = dma.done [#allocation5], 128
    $region13: #{tpu_custom_call.1} parent=1 // pred_fallthru
      _
    // Predicated region
    $region14: #{tpu_custom_call.1} parent=1 // pred_check
      _
    $region15: #{tpu_custom_call.1} parent=1 // pred_check_branch
      %37 = sbr.rel (0) target = $region17
    $region16: #{tpu_custom_call.1} parent=1 // pred_region
      %39 = dma.done [#allocation8], 128
    $region17: #{tpu_custom_call.1} parent=1 // pred_fallthru
      _
    %p40 = scmp.eq.s32.totalorder 0, 0
    // Predicated region
    $region18: #{tpu_custom_call.1} parent=1 // pred_check
      %p41 = pneg %p40
    $region19: #{tpu_custom_call.1} parent=1 // pred_check_branch
      %43 = sbr.rel (%p41) target = $region21
    $region20: #{tpu_custom_call.1} parent=1 // pred_region
      %vm44 = vcmask 261120
      %45 = vst.msk [vmem:[#allocation2] sm:$0xff] %vm44, 0.0
      %46 = vst.msk [vmem:[#allocation3] sm:$0xff] %vm44, 0.0
    $region21: #{tpu_custom_call.1} parent=1 // pred_fallthru
      _
    %v47 = vld [vmem:[#allocation4] sm:$0xff]
    %v48 = vmul.f32 %v47, %v47
    %v49 = vld [vmem:[#allocation2] sm:$0xff]
    %v50 = vadd.f32 %v49, %v47
    %vm51 = vcmask 261120
    %52 = vst.msk [vmem:[#allocation2] sm:$0xff] %vm51, %v50
    %v53 = vld [vmem:[#allocation3] sm:$0xff]
    %v54 = vadd.f32 %v53, %v48
    %55 = vst.msk [vmem:[#allocation3] sm:$0xff] %vm51, %v54
    // Predicated region
    $region22: #{tpu_custom_call.1} parent=1 // pred_check
      %p56 = pneg %p40
    $region23: #{tpu_custom_call.1} parent=1 // pred_check_branch
      %58 = sbr.rel (%p56) target = $region25
    $region24: #{tpu_custom_call.1} parent=1 // pred_region
      %v59 = vld [vmem:[#allocation2] sm:$0xff]
      %v60 = vsel %vm51, %v59, 0.0
      %v61 = vrot.slane %v60, 4
      %v62 = vadd.f32 %v60, %v61
      %v63 = vrot.slane %v62, 2
      %v64 = vadd.f32 %v62, %v63
      %v65 = vrot.slane %v64, 1
      %v66 = vadd.f32 %v64, %v65
      %v67 = vld [vmem:[#allocation3] sm:$0xff]
      %v68 = vsel %vm51, %v67, 0.0
      %v69 = vrot.slane %v68, 4
      %v70 = vadd.f32 %v68, %v69
      %v71 = vrot.slane %v70, 2
      %v72 = vadd.f32 %v70, %v71
      %v73 = vrot.slane %v72, 1
      %v74 = vadd.f32 %v72, %v73
      %v75 = vmul.f32 %v66, 0.125
      %v76 = vmul.f32 %v74, 0.125
      %v77 = vmul.f32 %v75, %v75
      %v78 = vsub.f32 %v76, %v77
      %v79 = vmax.f32 %v78, 0.0
      %v80 = vmul.f32 %v79, 1.1428572
      %v81 = vld [vmem:[#allocation7] sm:$0x1]
      %v82 = vld [vmem:[#allocation7 + $0x1] sm:$0x1]
      %v83 = vld [vmem:[#allocation7 + $0x2] sm:$0x1]
      %v84 = vld [vmem:[#allocation7 + $0x3] sm:$0x1]
      %v85 = vld [vmem:[#allocation7 + $0x4] sm:$0x1]
      %v86 = vmul.f32 %v81, 0.9
      %v87 = vmul.f32 %v75, 0.1
      %v88 = vadd.f32 %v86, %v87
      %v89 = vmul.f32 %v82, 0.999
      %v90 = vmul.f32 %v76, 0.001
      %v91 = vadd.f32 %v89, %v90
      %v92 = vmul.f32 %v83, 0.999
      %v93 = vmul.f32 %v80, 0.001
      %v94 = vadd.f32 %v92, %v93
      %v95 = vmul.f32 %v88, %v84
      %v96 = vmul.f32 %v91, %v85
      %v97 = vmul.f32 %v94, %v85
      %v98 = vmul.f32 %v95, %v95
      %v99 = vsub.f32 %v96, %v98
      %vm100 = vcmask 253952
      %101 = vst.msk [vmem:[#allocation9] sm:$0x1] %vm100, %v88
      %102 = vst.msk [vmem:[#allocation9 + $0x1] sm:$0x1] %vm100, %v91
      %103 = vst.msk [vmem:[#allocation9 + $0x2] sm:$0x1] %vm100, %v94
      %104 = vst.msk [vmem:[#allocation9 + $0x3] sm:$0x1] %vm100, %v95
      %105 = vst.msk [vmem:[#allocation9 + $0x4] sm:$0x1] %vm100, %v96
      %106 = vst.msk [vmem:[#allocation9 + $0x5] sm:$0x1] %vm100, %v97
      %107 = vst.msk [vmem:[#allocation9 + $0x6] sm:$0x1] %vm100, %v99
      %108 = vst.msk [vmem:[#allocation9 + $0x7] sm:$0x1] %vm100, 0.0
    $region25: #{tpu_custom_call.1} parent=1 // pred_fallthru
      _
    // Predicated region
    $region26: #{tpu_custom_call.1} parent=1 // pred_check
      _
    $region27: #{tpu_custom_call.1} parent=1 // pred_check_branch
      %110 = sbr.rel (0) target = $region29
    $region28: #{tpu_custom_call.1} parent=1 // pred_region
      %112 = vsyncadd [#allocation6], 0
      %s114 = sshll.u32 [#allocation9], 4
      %s115 = int_to_ptr.vmem [resolvable:$true] %s114
      %s116 = sshll.u32 %s2, 4
      %s117 = int_to_ptr.hbm [resolvable:$true] %s116
      %119 = dma.vmem_to_hbm [thread:$0]  %s115, 128, %s117, [#allocation6]
    $region29: #{tpu_custom_call.1} parent=1 // pred_fallthru
      _
    // Predicated region
    $region30: #{tpu_custom_call.1} parent=1 // pred_check
      _
    $region31: #{tpu_custom_call.1} parent=1 // pred_check_branch
      %121 = sbr.rel (0) target = $region33
    $region32: #{tpu_custom_call.1} parent=1 // pred_region
      %123 = dma.done [#allocation6], 128
    $region33: #{tpu_custom_call.1} parent=1 // pred_fallthru
      _
    %124 = vsyncpa [#allocation5], 1
    %125 = vsyncpa [#allocation8], 1
    %126 = vsyncpa [#allocation6], 1

</llo_original>
